<compile_context>
chip_gen: v7x
topology: tpu7x:2x2x1
jax: 0.10.0
libtpu: 0.0.40
codegen_flags: <defaults>
</compile_context>

<pallas_src>
import functools

import jax
import jax.numpy as jnp
from jax.experimental import pallas as pl
from jax.experimental.pallas import tpu as pltpu

BN_EPS = 1e-5
LANE = 128


def _round_up(x, m):
    return ((x + m - 1) // m) * m


# ----------------------------------------------------------------------------
# Kernels
# ----------------------------------------------------------------------------
def decoder_kernel_streamed(x_ref, w_in_ref, b_in_ref, w_h_ref, b_h_ref,
                            w_out_ref, b_out_ref, o_ref, h_ref):
    """grid = (batch_tiles, n_layers); hidden weights streamed one layer per
    step, bf16 activation carried in VMEM scratch across layer steps."""
    l = pl.program_id(1)

    # input block: Linear -> ReLU  (Dropout = identity; BN folded forward)
    @pl.when(l == 0)
    def _():
        h0 = jnp.dot(x_ref[...], w_in_ref[...],
                     preferred_element_type=jnp.float32)
        h_ref[...] = jnp.maximum(h0 + b_in_ref[...], 0.0).astype(jnp.bfloat16)

    # hidden block l: Linear -> ReLU  (weight tile for this layer only)
    hh = jnp.dot(h_ref[...], w_h_ref[0], preferred_element_type=jnp.float32)
    h_ref[...] = jnp.maximum(hh + b_h_ref[0], 0.0).astype(jnp.bfloat16)

    # output block: Linear -> ReLU
    @pl.when(l == pl.num_programs(1) - 1)
    def _():
        o = jnp.dot(h_ref[...], w_out_ref[...],
                    preferred_element_type=jnp.float32)
        o_ref[...] = jnp.maximum(o + b_out_ref[...], 0.0)


def decoder_kernel_nohidden(x_ref, w_in_ref, b_in_ref, w_out_ref, b_out_ref,
                            o_ref):
    """n_layers == 0: input block + output block only (no hidden-weight DMA)."""
    h = jnp.dot(x_ref[...], w_in_ref[...], preferred_element_type=jnp.float32)
    h = jnp.maximum(h + b_in_ref[...], 0.0).astype(jnp.bfloat16)
    o = jnp.dot(h, w_out_ref[...], preferred_element_type=jnp.float32)
    o_ref[...] = jnp.maximum(o + b_out_ref[...], 0.0)


# ----------------------------------------------------------------------------
# Wrapper
# ----------------------------------------------------------------------------
def _pick_tile_b(batch):
    # tile_b <= 128: batch >= 256 then gives >= 2 batch grid steps so the
    # "parallel" axis can shard across v7x's two TensorCores; 128 also matches
    # v5e's 128-wide MXU and keeps activation/accumulator VMEM small everywhere.
    if batch >= 128:
        return 128
    return _round_up(batch, 16)


def _vmem_limit_bytes(tile_b, Lp, Hp, Op):
    try:
        cap_total = int(pltpu.get_tpu_info().vmem_capacity_bytes)
    except Exception:
        cap_total = 64 << 20          # conservative: v7x per-TC VMEM
    cap = int(cap_total * 0.70)       # leave room for Mosaic internal scratch
    # Default pipelining double-buffers every BlockSpec (constant-index blocks
    # included).  TODO(synk): pipeline_mode=pl.Buffered(1) on the constant-index
    # weight blocks would halve their footprint once robust on all generations.
    need = 2 * (tile_b * Lp * 2       # x tile      (bf16)
                + Lp * Hp * 2         # w_in        (bf16, resident)
                + Hp * 4              # b_in        (f32)
                + Hp * Hp * 2         # w_h         (bf16, one streamed layer)
                + Hp * 4              # b_h         (f32)
                + Hp * Op * 2         # w_out       (bf16, resident)
                + Op * 4              # b_out       (f32)
                + tile_b * Op * 4)    # o tile      (f32)
    need += tile_b * Hp * 2           # h scratch   (bf16)
    need += 4 << 20                   # headroom
    return min(max(need, 16 << 20), cap)


def decoder_forward(x, fp, *, n_layers):
    batch, latent = x.shape
    Lp, Hp = fp["w_in"].shape
    Op = fp["w_out"].shape[1]

    tile_b = _pick_tile_b(batch)
    b_pad = _round_up(batch, tile_b)
    nbt = b_pad // tile_b

    x_p = jnp.zeros((b_pad, Lp), jnp.bfloat16)
    x_p = x_p.at[:batch, :latent].set(x.astype(jnp.bfloat16))

    # advisory cost estimate (padded shapes)
    flops = 2 * b_pad * (Lp * Hp + n_layers * Hp * Hp + Hp * Op)
    bytes_accessed = (x_p.size * 2 + b_pad * Op * 4
                      + 2 * (Lp * Hp + Hp * Op) + 4 * (Hp + Op)
                      + nbt * n_layers * (Hp * Hp * 2 + Hp * 4))
    cost = pl.CostEstimate(flops=flops, transcendentals=0,
                           bytes_accessed=int(bytes_accessed))
    vmem_limit = _vmem_limit_bytes(tile_b, Lp, Hp, Op)

    if n_layers == 0:
        out_p = pl.pallas_call(
            decoder_kernel_nohidden,
            out_shape=jax.ShapeDtypeStruct((b_pad, Op), jnp.float32),
            grid=(nbt,),
            in_specs=[
                pl.BlockSpec((tile_b, Lp), lambda i: (i, 0)),   # x (batch-tiled)
                pl.BlockSpec((Lp, Hp), lambda i: (0, 0)),       # w_in
                pl.BlockSpec((1, Hp), lambda i: (0, 0)),        # b_in
                pl.BlockSpec((Hp, Op), lambda i: (0, 0)),       # w_out
                pl.BlockSpec((1, Op), lambda i: (0, 0)),        # b_out
            ],
            out_specs=pl.BlockSpec((tile_b, Op), lambda i: (i, 0)),
            compiler_params=pltpu.CompilerParams(
                dimension_semantics=("parallel",),
                vmem_limit_bytes=vmem_limit),
            cost_estimate=cost,
        )(x_p, fp["w_in"], fp["b_in"], fp["w_out"], fp["b_out"])
    else:
        out_p = pl.pallas_call(
            decoder_kernel_streamed,
            out_shape=jax.ShapeDtypeStruct((b_pad, Op), jnp.float32),
            grid=(nbt, n_layers),
            in_specs=[
                pl.BlockSpec((tile_b, Lp), lambda i, l: (i, 0)),    # x
                pl.BlockSpec((Lp, Hp), lambda i, l: (0, 0)),        # w_in
                pl.BlockSpec((1, Hp), lambda i, l: (0, 0)),         # b_in
                pl.BlockSpec((1, Hp, Hp), lambda i, l: (l, 0, 0)),  # w_h (streamed)
                pl.BlockSpec((1, 1, Hp), lambda i, l: (l, 0, 0)),   # b_h (streamed)
                pl.BlockSpec((Hp, Op), lambda i, l: (0, 0)),        # w_out
                pl.BlockSpec((1, Op), lambda i, l: (0, 0)),         # b_out
            ],
            out_specs=pl.BlockSpec((tile_b, Op), lambda i, l: (i, 0)),
            scratch_shapes=[pltpu.VMEM((tile_b, Hp), jnp.bfloat16)],
            compiler_params=pltpu.CompilerParams(
                dimension_semantics=("parallel", "arbitrary"),
                vmem_limit_bytes=vmem_limit),
            cost_estimate=cost,
        )(x_p, fp["w_in"], fp["b_in"], fp["w_h"], fp["b_h"],
          fp["w_out"], fp["b_out"])

    return out_p[:batch, :fp["output_dim"]]


# ----------------------------------------------------------------------------
# Parameter construction (PyTorch-like) and BN folding / padding / bf16 cast.
# ----------------------------------------------------------------------------
def make_params(key, latent_dim, hidden_dim, output_dim, n_layers):
    ks = jax.random.split(key, 8)

    def lin(k, fan_in, fan_out):
        bound = 1.0 / jnp.sqrt(fan_in)
        kw, kb = jax.random.split(k)
        w = jax.random.uniform(kw, (fan_in, fan_out), jnp.float32, -bound, bound)
        b = jax.random.uniform(kb, (1, fan_out), jnp.float32, -bound, bound)
        return w, b

    def bn(k, dim, lead=()):
        kg, kb, km, kv = jax.random.split(k, 4)
        gamma = 1.0 + 0.1 * jax.random.normal(kg, lead + (1, dim), jnp.float32)
        beta = 0.1 * jax.random.normal(kb, lead + (1, dim), jnp.float32)
        rmean = 0.1 * jax.random.normal(km, lead + (1, dim), jnp.float32)
        rvar = 1.0 + 0.1 * jax.random.uniform(kv, lead + (1, dim), jnp.float32)
        return jnp.concatenate([gamma, beta, rmean, rvar], axis=-2)  # (...,4,dim)

    w_in, b_in = lin(ks[0], latent_dim, hidden_dim)
    bn_in = bn(ks[1], hidden_dim)

    hw, hb = [], []
    for i in range(max(n_layers, 1)):
        w, b = lin(jax.random.fold_in(ks[2], i), hidden_dim, hidden_dim)
        hw.append(w); hb.append(b)
    w_h = jnp.stack(hw)
    b_h = jnp.stack(hb)
    bn_h = bn(ks[3], hidden_dim, lead=(max(n_layers, 1),))

    w_out, b_out = lin(ks[4], hidden_dim, output_dim)
    return dict(w_in=w_in, b_in=b_in, bn_in=bn_in,
                w_h=w_h, b_h=b_h, bn_h=bn_h,
                w_out=w_out, b_out=b_out)


def prepare_params(p, *, n_layers, latent_dim, hidden_dim, output_dim):
    """Fold eval-mode BN into the next Linear, pad to 128-lane shapes, cast bf16."""
    def bn_scale_shift(rows):
        gamma, beta, rmean, rvar = rows[0], rows[1], rows[2], rows[3]
        scale = gamma * jax.lax.rsqrt(rvar + BN_EPS)
        shift = beta - rmean * scale
        return scale, shift

    # Linear list: input, hidden[0..n-1], output  (weights [in,out], bias [out])
    linears = [(p["w_in"], p["b_in"][0])]
    for l in range(n_layers):
        linears.append((p["w_h"][l], p["b_h"][l][0]))
    linears.append((p["w_out"], p["b_out"][0]))

    # Every BN output feeds the next Linear -> fold scale/shift forward.
    bns = [p["bn_in"]] + [p["bn_h"][l] for l in range(n_layers)]
    for i, rows in enumerate(bns):
        scale, shift = bn_scale_shift(rows)
        w_next, b_next = linears[i + 1]
        linears[i + 1] = (scale[:, None] * w_next, b_next + shift @ w_next)

    Lp = _round_up(latent_dim, LANE)
    Hp = _round_up(hidden_dim, LANE)
    Op = _round_up(output_dim, LANE)

    def pad2(w, r, c):
        return jnp.zeros((r, c), jnp.float32).at[:w.shape[0], :w.shape[1]].set(w)

    def pad1(b, c):
        return jnp.zeros((1, c), jnp.float32).at[0, :b.shape[0]].set(b)

    w_in, b_in = linears[0]
    w_out, b_out = linears[-1]

    out = dict(
        w_in=pad2(w_in, Lp, Hp).astype(jnp.bfloat16), b_in=pad1(b_in, Hp),
        w_out=pad2(w_out, Hp, Op).astype(jnp.bfloat16), b_out=pad1(b_out, Op),
        output_dim=output_dim,
    )
    if n_layers > 0:
        out["w_h"] = jnp.stack(
            [pad2(linears[1 + l][0], Hp, Hp) for l in range(n_layers)]
        ).astype(jnp.bfloat16)
        out["b_h"] = jnp.stack(
            [pad1(linears[1 + l][1], Hp) for l in range(n_layers)])
    return out


# ----------------------------------------------------------------------------
# References.
# ----------------------------------------------------------------------------
def decoder_ref_f32(x, p, *, n_layers):
    """Pure-JAX f32 reference with explicit eval-mode BatchNorm (semantic check)."""
    def bn_eval(h, rows):
        return (h - rows[2]) * jax.lax.rsqrt(rows[3] + BN_EPS) * rows[0] + rows[1]
    h = bn_eval(jnp.maximum(x @ p["w_in"] + p["b_in"], 0.0), p["bn_in"])
    for l in range(n_layers):
        h = bn_eval(jnp.maximum(h @ p["w_h"][l] + p["b_h"][l], 0.0), p["bn_h"][l])
    return jnp.maximum(h @ p["w_out"] + p["b_out"], 0.0)


def decoder_ref_bf16(x, fp, *, n_layers, latent_dim):
    """Pure-JAX reference using the same folded/padded/bf16 params as the kernel."""
    Lp = fp["w_in"].shape[0]
    xb = jnp.zeros((x.shape[0], Lp), jnp.bfloat16)
    xb = xb.at[:, :latent_dim].set(x.astype(jnp.bfloat16))
    h = jnp.maximum(
        jnp.dot(xb, fp["w_in"], preferred_element_type=jnp.float32) + fp["b_in"],
        0.0).astype(jnp.bfloat16)
    for l in range(n_layers):
        h = jnp.maximum(
            jnp.dot(h, fp["w_h"][l], preferred_element_type=jnp.float32)
            + fp["b_h"][l], 0.0).astype(jnp.bfloat16)
    o = jnp.maximum(
        jnp.dot(h, fp["w_out"], preferred_element_type=jnp.float32)
        + fp["b_out"], 0.0)
    return o[:, :fp["output_dim"]]


if __name__ == "__main__":
    # small decoder: latent_dim=32, hidden_dim=64, output_dim=16, n_layers=2
    batch, latent_dim, hidden_dim, output_dim, n_layers = 8, 32, 64, 16, 2

    key = jax.random.PRNGKey(0)
    kx, kp = jax.random.split(key)
    x = jax.random.normal(kx, (batch, latent_dim), jnp.float32)
    params = make_params(kp, latent_dim, hidden_dim, output_dim, n_layers)
    fparams = prepare_params(params, n_layers=n_layers, latent_dim=latent_dim,
                             hidden_dim=hidden_dim, output_dim=output_dim)

    out = decoder_forward(x, fparams, n_layers=n_layers)
    out = jax.block_until_ready(out)
    assert out.shape == (batch, output_dim)

    # exact-semantics check against a reference using identical bf16 math
    ref_bf16 = decoder_ref_bf16(x, fparams, n_layers=n_layers, latent_dim=latent_dim)
    assert jnp.allclose(out, ref_bf16, atol=2e-3, rtol=2e-3), \
        "mismatch vs bf16-matched reference"

    # loose check against the full-f32 eval-mode module semantics
    ref_f32 = decoder_ref_f32(x, params, n_layers=n_layers)
    assert jnp.allclose(out, ref_f32, atol=1e-1, rtol=1e-1), \
        "mismatch vs f32 semantic reference"

    # degenerate configuration: n_layers=0 path (no hidden-weight DMA)
    params0 = make_params(kp, latent_dim, hidden_dim, output_dim, 0)
    fparams0 = prepare_params(params0, n_layers=0, latent_dim=latent_dim,
                              hidden_dim=hidden_dim, output_dim=output_dim)
    out0 = jax.block_until_ready(decoder_forward(x, fparams0, n_layers=0))
    ref0 = decoder_ref_bf16(x, fparams0, n_layers=0, latent_dim=latent_dim)
    assert out0.shape == (batch, output_dim)
    assert jnp.allclose(out0, ref0, atol=2e-3, rtol=2e-3), \
        "mismatch vs bf16-matched reference (n_layers=0)"

    # TODO(synk): train-mode Dropout / batch-statistics BatchNorm are not
    # reproduced (inference semantics implemented, BN folded into weights).
    print("KERNEL_OK")
</pallas_src>

<mosaic_0001>
module attributes {stable_mosaic.version = 11 : i64} {
  func.func @decoder_kernel_streamed(%arg0: i32, %arg1: i32, %arg2: memref<16x128xbf16, #tpu.memory_space<vmem>>, %arg3: memref<128x128xbf16, #tpu.memory_space<vmem>>, %arg4: memref<1x128xf32, #tpu.memory_space<vmem>>, %arg5: memref<1x128x128xbf16, #tpu.memory_space<vmem>>, %arg6: memref<1x1x128xf32, #tpu.memory_space<vmem>>, %arg7: memref<128x128xbf16, #tpu.memory_space<vmem>>, %arg8: memref<1x128xf32, #tpu.memory_space<vmem>>, %arg9: memref<16x128xf32, #tpu.memory_space<vmem>>, %arg10: memref<16x128xbf16, #tpu.memory_space<vmem>>) attributes {dimension_semantics = [#tpu.dimension_semantics<parallel>, #tpu.dimension_semantics<arbitrary>], iteration_bounds = array<i64: 1, 2>, scalar_prefetch = 0 : i64, scratch_operands = 1 : i64, tpu.core_type = #tpu.core_type<tc>, window_params = [{transform_indices = @transform_0, window_bounds = array<i64: 16, 128>}, {pipeline_mode = #tpu.pipeline_mode<synchronous>, transform_indices = @transform_1, window_bounds = array<i64: 128, 128>}, {pipeline_mode = #tpu.pipeline_mode<synchronous>, transform_indices = @transform_2, window_bounds = array<i64: 1, 128>}, {transform_indices = @transform_3, window_bounds = array<i64: 1, 128, 128>}, {transform_indices = @transform_4, window_bounds = array<i64: 1, 1, 128>}, {pipeline_mode = #tpu.pipeline_mode<synchronous>, transform_indices = @transform_5, window_bounds = array<i64: 128, 128>}, {pipeline_mode = #tpu.pipeline_mode<synchronous>, transform_indices = @transform_6, window_bounds = array<i64: 1, 128>}, {transform_indices = @transform_7, window_bounds = array<i64: 16, 128>}]} {
    %c0_i32 = arith.constant 0 : i32
    %0 = arith.cmpi eq, %arg1, %c0_i32 : i32
    %1 = arith.extui %0 : i1 to i32
    %c0_i32_0 = arith.constant 0 : i32
    %2 = arith.cmpi ne, %1, %c0_i32_0 : i32
    scf.if %2 {
      %c0_12 = arith.constant 0 : index
      %c0_13 = arith.constant 0 : index
      %18 = vector.load %arg2[%c0_12, %c0_13] : memref<16x128xbf16, #tpu.memory_space<vmem>>, vector<16x128xbf16>
      %c0_14 = arith.constant 0 : index
      %c0_15 = arith.constant 0 : index
      %19 = vector.load %arg3[%c0_14, %c0_15] : memref<128x128xbf16, #tpu.memory_space<vmem>>, vector<128x128xbf16>
      %cst_16 = arith.constant dense<0.000000e+00> : vector<16x128xf32>
      %20 = tpu.matmul %18, %19, %cst_16 {dimension_numbers = #tpu.dot_dimension_numbers<[1], [0], [0], [1], [0, 0, 1, 1], [], []>} : vector<16x128xbf16>, vector<128x128xbf16>, vector<16x128xf32> -> vector<16x128xf32>
      %c0_17 = arith.constant 0 : index
      %c0_18 = arith.constant 0 : index
      %21 = vector.load %arg4[%c0_17, %c0_18] : memref<1x128xf32, #tpu.memory_space<vmem>>, vector<1x128xf32>
      %22 = vector.broadcast %21 : vector<1x128xf32> to vector<16x128xf32>
      %23 = arith.addf %20, %22 : vector<16x128xf32>
      %cst_19 = arith.constant 0.000000e+00 : f32
      %24 = vector.broadcast %cst_19 : f32 to vector<16x128xf32>
      %25 = arith.maximumf %23, %24 : vector<16x128xf32>
      %26 = arith.truncf %25 : vector<16x128xf32> to vector<16x128xbf16>
      %c0_20 = arith.constant 0 : index
      %c0_21 = arith.constant 0 : index
      %27 = vector.load %arg10[%c0_20, %c0_21] : memref<16x128xbf16, #tpu.memory_space<vmem>>, vector<16x128xbf16>
      tpu.vector_store %arg10[%c0_20, %c0_21], %26 {strides = array<i32>} : memref<16x128xbf16, #tpu.memory_space<vmem>>, vector<16x128xbf16>,
    } else {
    }
    %c0 = arith.constant 0 : index
    %c0_1 = arith.constant 0 : index
    %3 = vector.load %arg10[%c0, %c0_1] : memref<16x128xbf16, #tpu.memory_space<vmem>>, vector<16x128xbf16>
    %c0_2 = arith.constant 0 : index
    %c0_3 = arith.constant 0 : index
    %c0_4 = arith.constant 0 : index
    %4 = vector.load %arg5[%c0_2, %c0_3, %c0_4] : memref<1x128x128xbf16, #tpu.memory_space<vmem>>, vector<1x128x128xbf16>
    %5 = vector.shape_cast %4 : vector<1x128x128xbf16> to vector<128x128xbf16>
    %cst = arith.constant dense<0.000000e+00> : vector<16x128xf32>
    %6 = tpu.matmul %3, %5, %cst {dimension_numbers = #tpu.dot_dimension_numbers<[1], [0], [0], [1], [0, 0, 1, 1], [], []>} : vector<16x128xbf16>, vector<128x128xbf16>, vector<16x128xf32> -> vector<16x128xf32>
    %c0_5 = arith.constant 0 : index
    %c0_6 = arith.constant 0 : index
    %c0_7 = arith.constant 0 : index
    %7 = vector.load %arg6[%c0_5, %c0_6, %c0_7] : memref<1x1x128xf32, #tpu.memory_space<vmem>>, vector<1x1x128xf32>
    %8 = vector.shape_cast %7 : vector<1x1x128xf32> to vector<1x128xf32>
    %9 = vector.broadcast %8 : vector<1x128xf32> to vector<16x128xf32>
    %10 = arith.addf %6, %9 : vector<16x128xf32>
    %cst_8 = arith.constant 0.000000e+00 : f32
    %11 = vector.broadcast %cst_8 : f32 to vector<16x128xf32>
    %12 = arith.maximumf %10, %11 : vector<16x128xf32>
    %13 = arith.truncf %12 : vector<16x128xf32> to vector<16x128xbf16>
    %c0_9 = arith.constant 0 : index
    %c0_10 = arith.constant 0 : index
    %14 = vector.load %arg10[%c0_9, %c0_10] : memref<16x128xbf16, #tpu.memory_space<vmem>>, vector<16x128xbf16>
    tpu.vector_store %arg10[%c0_9, %c0_10], %13 {strides = array<i32>} : memref<16x128xbf16, #tpu.memory_space<vmem>>, vector<16x128xbf16>,
    %c1_i32 = arith.constant 1 : i32
    %15 = arith.cmpi eq, %arg1, %c1_i32 : i32
    %16 = arith.extui %15 : i1 to i32
    %c0_i32_11 = arith.constant 0 : i32
    %17 = arith.cmpi ne, %16, %c0_i32_11 : i32
    scf.if %17 {
      %c0_12 = arith.constant 0 : index
      %c0_13 = arith.constant 0 : index
      %18 = vector.load %arg10[%c0_12, %c0_13] : memref<16x128xbf16, #tpu.memory_space<vmem>>, vector<16x128xbf16>
      %c0_14 = arith.constant 0 : index
      %c0_15 = arith.constant 0 : index
      %19 = vector.load %arg7[%c0_14, %c0_15] : memref<128x128xbf16, #tpu.memory_space<vmem>>, vector<128x128xbf16>
      %cst_16 = arith.constant dense<0.000000e+00> : vector<16x128xf32>
      %20 = tpu.matmul %18, %19, %cst_16 {dimension_numbers = #tpu.dot_dimension_numbers<[1], [0], [0], [1], [0, 0, 1, 1], [], []>} : vector<16x128xbf16>, vector<128x128xbf16>, vector<16x128xf32> -> vector<16x128xf32>
      %c0_17 = arith.constant 0 : index
      %c0_18 = arith.constant 0 : index
      %21 = vector.load %arg8[%c0_17, %c0_18] : memref<1x128xf32, #tpu.memory_space<vmem>>, vector<1x128xf32>
      %22 = vector.broadcast %21 : vector<1x128xf32> to vector<16x128xf32>
      %23 = arith.addf %20, %22 : vector<16x128xf32>
      %cst_19 = arith.constant 0.000000e+00 : f32
      %24 = vector.broadcast %cst_19 : f32 to vector<16x128xf32>
      %25 = arith.maximumf %23, %24 : vector<16x128xf32>
      %c0_20 = arith.constant 0 : index
      %c0_21 = arith.constant 0 : index
      %26 = vector.load %arg9[%c0_20, %c0_21] : memref<16x128xf32, #tpu.memory_space<vmem>>, vector<16x128xf32>
      tpu.vector_store %arg9[%c0_20, %c0_21], %25 {strides = array<i32>} : memref<16x128xf32, #tpu.memory_space<vmem>>, vector<16x128xf32>,
    } else {
    }
    return
  }
  func.func @transform_0(%arg0: i32, %arg1: i32) -> (i32, i32) {
    %c0_i32 = arith.constant 0 : i32
    %c0_i32_0 = arith.constant 0 : i32
    return %arg0, %c0_i32 : i32, i32
  }
  func.func @transform_1(%arg0: i32, %arg1: i32) -> (i32, i32) {
    %c0_i32 = arith.constant 0 : i32
    %c0_i32_0 = arith.constant 0 : i32
    %c0_i32_1 = arith.constant 0 : i32
    return %c0_i32, %c0_i32_0 : i32, i32
  }
  func.func @transform_2(%arg0: i32, %arg1: i32) -> (i32, i32) {
    %c0_i32 = arith.constant 0 : i32
    %c0_i32_0 = arith.constant 0 : i32
    %c0_i32_1 = arith.constant 0 : i32
    return %c0_i32, %c0_i32_0 : i32, i32
  }
  func.func @transform_3(%arg0: i32, %arg1: i32) -> (i32, i32, i32) {
    %c0_i32 = arith.constant 0 : i32
    %c0_i32_0 = arith.constant 0 : i32
    %c0_i32_1 = arith.constant 0 : i32
    return %arg1, %c0_i32, %c0_i32_0 : i32, i32, i32
  }
  func.func @transform_4(%arg0: i32, %arg1: i32) -> (i32, i32, i32) {
    %c0_i32 = arith.constant 0 : i32
    %c0_i32_0 = arith.constant 0 : i32
    %c0_i32_1 = arith.constant 0 : i32
    return %arg1, %c0_i32, %c0_i32_0 : i32, i32, i32
  }
  func.func @transform_5(%arg0: i32, %arg1: i32) -> (i32, i32) {
    %c0_i32 = arith.constant 0 : i32
    %c0_i32_0 = arith.constant 0 : i32
    %c0_i32_1 = arith.constant 0 : i32
    return %c0_i32, %c0_i32_0 : i32, i32
  }
  func.func @transform_6(%arg0: i32, %arg1: i32) -> (i32, i32) {
    %c0_i32 = arith.constant 0 : i32
    %c0_i32_0 = arith.constant 0 : i32
    %c0_i32_1 = arith.constant 0 : i32
    return %c0_i32, %c0_i32_0 : i32, i32
  }
  func.func @transform_7(%arg0: i32, %arg1: i32) -> (i32, i32) {
    %c0_i32 = arith.constant 0 : i32
    %c0_i32_0 = arith.constant 0 : i32
    return %arg0, %c0_i32 : i32, i32
  }
}

</mosaic_0001>

<llo_original>
// kernel: tpu_custom_call.1
$region0: #{tpu_custom_call.1}
  #allocation0 [shape = 'u32[]', space=smem, size = 0x4, offset = 0x4, fixed_abs, tag = 'smem constant byte address 0x4 - core index']
  #allocation1 [shape = 'u32[144,128]{1,0:T(1,128)}', space=vmem, size = 0x12000, scoped, tag = 'internal scratch']
  #allocation2 [shape = 'bf16[16,128]{1,0:T(16,128)(2,1)}', space=vmem, size = 0x1000, scoped, tag = 'scratch operand']
  %s0 = inlined_call_operand.hbm [shape: bf16[16,128], index: 0, kind: input, shape index: {}]
  %s1 = inlined_call_operand.hbm [shape: bf16[128,128], index: 1, kind: input, shape index: {}]
  %s2 = inlined_call_operand.vmem [shape: f32[1,128], index: 2, kind: input, shape index: {}]
  %s3 = inlined_call_operand.hbm [shape: bf16[2,128,128], index: 3, kind: input, shape index: {}]
  %s4 = inlined_call_operand.vmem [shape: f32[2,1,128], index: 4, kind: input, shape index: {}]
  %s5 = inlined_call_operand.hbm [shape: bf16[128,128], index: 5, kind: input, shape index: {}]
  %s6 = inlined_call_operand.vmem [shape: f32[1,128], index: 6, kind: input, shape index: {}]
  %s7 = inlined_call_operand.hbm [shape: f32[16,128], index: 7, kind: output, shape index: {}]
  %s8 = sld [smem:[#allocation0]]
  $region85: #{tpu_custom_call.1} parent=0
    _
  %s10 = ssub.s32 1, %s8
  %s11 = scalar_select 0, %s10, %s8
  $region1: #{tpu_custom_call.1} parent=0
    #allocation3 [shape = 'u8[4096]{0}', space=vmem, size = 0x1000, scoped, tag = 'input window, operand 0, single buffered']
    #allocation4 [shape = 's32[2]{0}', space=sflag, size = 0x8, scoped, tag = 'scoped memory for tpu_custom_call.1']
    #allocation5 [shape = 's32[2]{0}', space=sflag, size = 0x8, scoped, tag = 'scoped memory for tpu_custom_call.1']
    #allocation6 [shape = 'u8[32768]{0}', space=vmem, size = 0x8000, scoped, tag = 'input window, operand 1, single buffered']
    #allocation7 [shape = 's32[1]{0}', space=sflag, size = 0x4, scoped, tag = 'scoped memory for tpu_custom_call.1']
    #allocation8 [shape = 'u8[65536]{0}', space=vmem, size = 0x10000, scoped, tag = 'input window, operand 3']
    #allocation9 [shape = 'u8[32768]{0}', space=vmem, size = 0x8000, scoped, tag = 'input window, operand 5, single buffered']
    #allocation10 [shape = 'u8[8192]{0}', space=vmem, size = 0x2000, scoped, tag = 'output window, operand 0, single buffered']
    %12 = vsyncpa [#allocation4], 0
    %13 = vsyncpa [#allocation7], 0
    %14 = vsyncpa [#allocation5], 0
    loop: start=0, step=1, limit=4
    $region2: #{tpu_custom_call.1} parent=1 // loop_pre_header
      _
    $region3: #{tpu_custom_call.1} parent=1 // loop_header
      %s16 = sphi 0, %s20
      %p17 = scmp.ge.s32.totalorder %s16, 4
      %s23 = sphi 0, %s35
      %s24 = sphi 0, %s31
      %s25 = sphi 0, %s23
      %s26 = sphi 0, %s24
      %s27 = sphi 0, %s25
      %s28 = sphi 0, %s26
      %s38 = sphi 0, %s40
      %s41 = sphi 0, %s38
      %s42 = sphi 0, %s41
      %s58 = sphi 0, %s42
      %s62 = sphi 0, %s62
      %s64 = sphi 0, %s62
      %s65 = sphi 0, %s64
      %s79 = sphi 0, %s65
      %s83 = sphi 0, %s83
      %s85 = sphi 0, %s83
      %s86 = sphi 0, %s85
      %s100 = sphi 0, %s86
      %s106 = sphi 0, %s108
      %s109 = sphi 0, %s106
      %s110 = sphi 0, %s109
      %s126 = sphi 0, %s110
      %s132 = sphi 0, %s134
      %s135 = sphi 0, %s132
      %s136 = sphi 0, %s135
      %s152 = sphi 0, %s136
      %s156 = sphi 0, %s156
      %s158 = sphi 0, %s156
      %s159 = sphi 0, %s158
      %s173 = sphi 0, %s159
      %s177 = sphi 0, %s177
      %s179 = sphi 0, %s177
      %s180 = sphi 0, %s179
      %s194 = sphi 0, %s180
      %s200 = sphi 0, %s202
      %s203 = sphi 0, %s200
      %s204 = sphi 0, %s203
      %s220 = sphi 0, %s204
    $region4: #{tpu_custom_call.1} parent=1 // loop_header_branch
      %19 = sbr.rel (%p17) target = $region8
    $region5: #{tpu_custom_call.1} parent=1 // loop_body
      %s21 = ssub.s32 %s16, 1
      %s22 = ssub.s32 %s16, 2
      %s29 = sadd.s32 1, %s24
      %p30 = scmp.ge.s32.totalorder %s29, 2
      %s31 = scalar_select %p30, 0, %s29
      %s32 = sadd.s32 1, %s23
      %s33 = scalar_select %p30, %s32, %s23
      %p34 = scmp.ge.s32.totalorder %s33, 1
      %s35 = scalar_select %p34, 0, %s33
      %s36 = ssub.s32 %s23, %s35
      %p37 = scmp.eq.s32.totalorder %s36, 0
      %s39 = sadd.s32 %s38, 1
      %s40 = scalar_select %p37, %s38, %s39
      %p43 = pneg %p37
      %p44 = scmp.eq.s32.totalorder %s16, 1
      %p45 = por %p43, %p44
      %p46 = scmp.ne.s32.totalorder %s38, %s41
      %p47 = scmp.eq.s32.totalorder %s16, 0
      %p48 = por %p46, %p47
      %p49 = scmp.ne.s32.totalorder %s38, %s41
      %p50 = scmp.eq.s32.totalorder %s21, 1
      %p51 = por %p49, %p50
      %p52 = scmp.ne.s32.totalorder %s41, %s42
      %p53 = scmp.eq.s32.totalorder %s21, 0
      %p54 = por %p52, %p53
      %p55 = scmp.ne.s32.totalorder %s41, %s42
      %p56 = scmp.eq.s32.totalorder %s22, 1
      %p57 = por %p55, %p56
      %p59 = scmp.ne.s32.totalorder %s42, %s58
      %p60 = scmp.eq.s32.totalorder %s22, 0
      %p61 = por %p59, %p60
      %s63 = sadd.s32 %s62, 1
      %p66 = scmp.eq.s32.totalorder %s16, 1
      %p67 = scmp.ne.s32.totalorder %s62, %s64
      %p68 = scmp.eq.s32.totalorder %s16, 0
      %p69 = por %p67, %p68
      %p70 = scmp.ne.s32.totalorder %s62, %s64
      %p71 = scmp.eq.s32.totalorder %s21, 1
      %p72 = por %p70, %p71
      %p73 = scmp.ne.s32.totalorder %s64, %s65
      %p74 = scmp.eq.s32.totalorder %s21, 0
      %p75 = por %p73, %p74
      %p76 = scmp.ne.s32.totalorder %s64, %s65
      %p77 = scmp.eq.s32.totalorder %s22, 1
      %p78 = por %p76, %p77
      %p80 = scmp.ne.s32.totalorder %s65, %s79
      %p81 = scmp.eq.s32.totalorder %s22, 0
      %p82 = por %p80, %p81
      %s84 = sadd.s32 %s83, 1
      %p87 = scmp.eq.s32.totalorder %s16, 1
      %p88 = scmp.ne.s32.totalorder %s83, %s85
      %p89 = scmp.eq.s32.totalorder %s16, 0
      %p90 = por %p88, %p89
      %p91 = scmp.ne.s32.totalorder %s83, %s85
      %p92 = scmp.eq.s32.totalorder %s21, 1
      %p93 = por %p91, %p92
      %p94 = scmp.ne.s32.totalorder %s85, %s86
      %p95 = scmp.eq.s32.totalorder %s21, 0
      %p96 = por %p94, %p95
      %p97 = scmp.ne.s32.totalorder %s85, %s86
      %p98 = scmp.eq.s32.totalorder %s22, 1
      %p99 = por %p97, %p98
      %p101 = scmp.ne.s32.totalorder %s86, %s100
      %p102 = scmp.eq.s32.totalorder %s22, 0
      %p103 = por %p101, %p102
      %s104 = ssub.s32 %s24, %s31
      %p105 = scmp.eq.s32.totalorder %s104, 0
      %s107 = sadd.s32 %s106, 1
      %s108 = scalar_select %p105, %s106, %s107
      %p111 = pneg %p105
      %p112 = scmp.eq.s32.totalorder %s16, 1
      %p113 = por %p111, %p112
      %p114 = scmp.ne.s32.totalorder %s106, %s109
      %p115 = scmp.eq.s32.totalorder %s16, 0
      %p116 = por %p114, %p115
      %p117 = scmp.ne.s32.totalorder %s106, %s109
      %p118 = scmp.eq.s32.totalorder %s21, 1
      %p119 = por %p117, %p118
      %p120 = scmp.ne.s32.totalorder %s109, %s110
      %p121 = scmp.eq.s32.totalorder %s21, 0
      %p122 = por %p120, %p121
      %p123 = scmp.ne.s32.totalorder %s109, %s110
      %p124 = scmp.eq.s32.totalorder %s22, 1
      %p125 = por %p123, %p124
      %p127 = scmp.ne.s32.totalorder %s110, %s126
      %p128 = scmp.eq.s32.totalorder %s22, 0
      %p129 = por %p127, %p128
      %s130 = ssub.s32 %s24, %s31
      %p131 = scmp.eq.s32.totalorder %s130, 0
      %s133 = sadd.s32 %s132, 1
      %s134 = scalar_select %p131, %s132, %s133
      %p137 = pneg %p131
      %p138 = scmp.eq.s32.totalorder %s16, 1
      %p139 = por %p137, %p138
      %p140 = scmp.ne.s32.totalorder %s132, %s135
      %p141 = scmp.eq.s32.totalorder %s16, 0
      %p142 = por %p140, %p141
      %p143 = scmp.ne.s32.totalorder %s132, %s135
      %p144 = scmp.eq.s32.totalorder %s21, 1
      %p145 = por %p143, %p144
      %p146 = scmp.ne.s32.totalorder %s135, %s136
      %p147 = scmp.eq.s32.totalorder %s21, 0
      %p148 = por %p146, %p147
      %p149 = scmp.ne.s32.totalorder %s135, %s136
      %p150 = scmp.eq.s32.totalorder %s22, 1
      %p151 = por %p149, %p150
      %p153 = scmp.ne.s32.totalorder %s136, %s152
      %p154 = scmp.eq.s32.totalorder %s22, 0
      %p155 = por %p153, %p154
      %s157 = sadd.s32 %s156, 1
      %p160 = scmp.eq.s32.totalorder %s16, 1
      %p161 = scmp.ne.s32.totalorder %s156, %s158
      %p162 = scmp.eq.s32.totalorder %s16, 0
      %p163 = por %p161, %p162
      %p164 = scmp.ne.s32.totalorder %s156, %s158
      %p165 = scmp.eq.s32.totalorder %s21, 1
      %p166 = por %p164, %p165
      %p167 = scmp.ne.s32.totalorder %s158, %s159
      %p168 = scmp.eq.s32.totalorder %s21, 0
      %p169 = por %p167, %p168
      %p170 = scmp.ne.s32.totalorder %s158, %s159
      %p171 = scmp.eq.s32.totalorder %s22, 1
      %p172 = por %p170, %p171
      %p174 = scmp.ne.s32.totalorder %s159, %s173
      %p175 = scmp.eq.s32.totalorder %s22, 0
      %p176 = por %p174, %p175
      %s178 = sadd.s32 %s177, 1
      %p181 = scmp.eq.s32.totalorder %s16, 1
      %p182 = scmp.ne.s32.totalorder %s177, %s179
      %p183 = scmp.eq.s32.totalorder %s16, 0
      %p184 = por %p182, %p183
      %p185 = scmp.ne.s32.totalorder %s177, %s179
      %p186 = scmp.eq.s32.totalorder %s21, 1
      %p187 = por %p185, %p186
      %p188 = scmp.ne.s32.totalorder %s179, %s180
      %p189 = scmp.eq.s32.totalorder %s21, 0
      %p190 = por %p188, %p189
      %p191 = scmp.ne.s32.totalorder %s179, %s180
      %p192 = scmp.eq.s32.totalorder %s22, 1
      %p193 = por %p191, %p192
      %p195 = scmp.ne.s32.totalorder %s180, %s194
      %p196 = scmp.eq.s32.totalorder %s22, 0
      %p197 = por %p195, %p196
      %s198 = ssub.s32 %s23, %s35
      %p199 = scmp.eq.s32.totalorder %s198, 0
      %s201 = sadd.s32 %s200, 1
      %s202 = scalar_select %p199, %s200, %s201
      %p205 = pneg %p199
      %p206 = scmp.eq.s32.totalorder %s16, 1
      %p207 = por %p205, %p206
      %p208 = scmp.ne.s32.totalorder %s200, %s203
      %p209 = scmp.eq.s32.totalorder %s16, 0
      %p210 = por %p208, %p209
      %p211 = scmp.ne.s32.totalorder %s200, %s203
      %p212 = scmp.eq.s32.totalorder %s21, 1
      %p213 = por %p211, %p212
      %p214 = scmp.ne.s32.totalorder %s203, %s204
      %p215 = scmp.eq.s32.totalorder %s21, 0
      %p216 = por %p214, %p215
      %p217 = scmp.ne.s32.totalorder %s203, %s204
      %p218 = scmp.eq.s32.totalorder %s22, 1
      %p219 = por %p217, %p218
      %p221 = scmp.ne.s32.totalorder %s204, %s220
      %p222 = scmp.eq.s32.totalorder %s22, 0
      %p223 = por %p221, %p222
      %p224 = scmp.le.s32.totalorder 1, %s16
      %p225 = scmp.lt.s32.totalorder %s16, 3
      %p226 = pnand %p224, %p225
      %p227 = pneg %p226
      // Predicated region
      $region9: #{tpu_custom_call.1} parent=5 // pred_check
        _
      $region10: #{tpu_custom_call.1} parent=5 // pred_check_branch
        %229 = sbr.rel (%p226) target = $region12
      $region11: #{tpu_custom_call.1} parent=5 // pred_region
        %s230 = ssub.s32 %s16, 1
        // Predicated region
        $region13: #{tpu_custom_call.1} parent=11 // pred_check
          %p231 = pneg %p54
        $region14: #{tpu_custom_call.1} parent=11 // pred_check_branch
          %233 = sbr.rel (%p231) target = $region16
        $region15: #{tpu_custom_call.1} parent=11 // pred_region
          %s234 = smul.u32 2, %s25
          %s236 = ssub.s32 128, 128
          %237 = vsyncadd [#allocation4], %s236
          %s238 = smul.addr %s234, 64
          %s239 = scalar_lea.hbm %s0, %s238
          %s240 = sshll.u32 [#allocation3], 4
          %s241 = int_to_ptr.vmem [resolvable:$true] %s240
          %246 = dma.hbm_to_vmem [thread:$0]  %s239, 128, %s241, [#allocation4], 64, 64, 4
        $region16: #{tpu_custom_call.1} parent=11 // pred_fallthru
          _
        // Predicated region
        $region17: #{tpu_custom_call.1} parent=11 // pred_check
          %p247 = pneg %p75
        $region18: #{tpu_custom_call.1} parent=11 // pred_check_branch
          %249 = sbr.rel (%p247) target = $region20
        $region19: #{tpu_custom_call.1} parent=11 // pred_region
          %s251 = ssub.s32 1024, 1024
          %252 = vsyncadd [#allocation7], %s251
          %s253 = sshll.u32 [#allocation6], 4
          %s254 = int_to_ptr.vmem [resolvable:$true] %s253
          %259 = dma.hbm_to_vmem [thread:$0]  %s1, 1024, %s254, [#allocation7], 64, 64, 4
        $region20: #{tpu_custom_call.1} parent=11 // pred_fallthru
          _
        // Predicated region
        $region21: #{tpu_custom_call.1} parent=11 // pred_check
          %p260 = pneg %p96
        $region22: #{tpu_custom_call.1} parent=11 // pred_check_branch
          %262 = sbr.rel (%p260) target = $region24
        $region23: #{tpu_custom_call.1} parent=11 // pred_region
          _
        $region24: #{tpu_custom_call.1} parent=11 // pred_fallthru
          _
        // Predicated region
        $region25: #{tpu_custom_call.1} parent=11 // pred_check
          %p263 = pneg %p169
        $region26: #{tpu_custom_call.1} parent=11 // pred_check_branch
          %265 = sbr.rel (%p263) target = $region28
        $region27: #{tpu_custom_call.1} parent=11 // pred_region
          %s267 = ssub.s32 1024, 1024
          %268 = vsyncadd [#allocation7], %s267
          %s269 = sshll.u32 [#allocation9], 4
          %s270 = int_to_ptr.vmem [resolvable:$true] %s269
          %275 = dma.hbm_to_vmem [thread:$0]  %s5, 1024, %s270, [#allocation7], 64, 64, 4
        $region28: #{tpu_custom_call.1} parent=11 // pred_fallthru
          _
        // Predicated region
        $region29: #{tpu_custom_call.1} parent=11 // pred_check
          %p276 = pneg %p190
        $region30: #{tpu_custom_call.1} parent=11 // pred_check_branch
          %278 = sbr.rel (%p276) target = $region32
        $region31: #{tpu_custom_call.1} parent=11 // pred_region
          _
        $region32: #{tpu_custom_call.1} parent=11 // pred_fallthru
          _
      $region12: #{tpu_custom_call.1} parent=5 // pred_fallthru
        _
      %p279 = scmp.lt.s32.totalorder %s16, 2
      // Predicated region
      $region33: #{tpu_custom_call.1} parent=5 // pred_check
        %p280 = pneg %p279
      $region34: #{tpu_custom_call.1} parent=5 // pred_check_branch
        %282 = sbr.rel (%p280) target = $region36
      $region35: #{tpu_custom_call.1} parent=5 // pred_region
        // Predicated region
        $region37: #{tpu_custom_call.1} parent=35 // pred_check
          %p283 = pneg %p116
        $region38: #{tpu_custom_call.1} parent=35 // pred_check_branch
          %285 = sbr.rel (%p283) target = $region40
        $region39: #{tpu_custom_call.1} parent=35 // pred_region
          %s286 = sand.u32 %s16, 1
          %s287 = scalar_lea.sflag [#allocation4], %s286
          %s288 = sand.u32 %s106, 1
          %s289 = smul.addr %s288, 64
          %s290 = scalar_lea.vmem [#allocation8], %s289
          %s292 = ssub.s32 1024, 1024
          %293 = vsyncadd %s287, %s292
          %s294 = smul.addr %s24, 16
          %s295 = smul.addr %s294, 64
          %s296 = scalar_lea.hbm %s3, %s295
          %s297 = sshll.u32 %s290, 4
          %s298 = int_to_ptr.vmem [resolvable:$true] %s297
          %303 = dma.hbm_to_vmem [thread:$0]  %s296, 1024, %s298, %s287, 64, 64, 4
        $region40: #{tpu_custom_call.1} parent=35 // pred_fallthru
          _
        // Predicated region
        $region41: #{tpu_custom_call.1} parent=35 // pred_check
          %p304 = pneg %p142
        $region42: #{tpu_custom_call.1} parent=35 // pred_check_branch
          %306 = sbr.rel (%p304) target = $region44
        $region43: #{tpu_custom_call.1} parent=35 // pred_region
          %p307 = scmp.lt.s32.totalorder %s24, 1
          %s308 = scalar_select %p307, %s24, 1
          %s309 = scalar_lea.vmem %s4, %s308
        $region44: #{tpu_custom_call.1} parent=35 // pred_fallthru
          _
      $region36: #{tpu_custom_call.1} parent=5 // pred_fallthru
        _
      %p310 = scmp.le.s32.totalorder 1, %s16
      %p311 = scmp.lt.s32.totalorder %s16, 3
      %p312 = pnand %p310, %p311
      %p313 = pneg %p312
      // Predicated region
      $region45: #{tpu_custom_call.1} parent=5 // pred_check
        _
      $region46: #{tpu_custom_call.1} parent=5 // pred_check_branch
        %315 = sbr.rel (%p312) target = $region48
      $region47: #{tpu_custom_call.1} parent=5 // pred_region
        %s316 = ssub.s32 %s16, 1
        // Predicated region
        $region49: #{tpu_custom_call.1} parent=47 // pred_check
          %p317 = pneg %p54
        $region50: #{tpu_custom_call.1} parent=47 // pred_check_branch
          %319 = sbr.rel (%p317) target = $region52
        $region51: #{tpu_custom_call.1} parent=47 // pred_region
          %320 = dma.done [#allocation4], 128
        $region52: #{tpu_custom_call.1} parent=47 // pred_fallthru
          _
        // Predicated region
        $region53: #{tpu_custom_call.1} parent=47 // pred_check
          %p321 = pneg %p75
        $region54: #{tpu_custom_call.1} parent=47 // pred_check_branch
          %323 = sbr.rel (%p321) target = $region56
        $region55: #{tpu_custom_call.1} parent=47 // pred_region
          %324 = dma.done [#allocation7], 1024
        $region56: #{tpu_custom_call.1} parent=47 // pred_fallthru
          _
        %s325 = sand.u32 %s21, 1
        %s326 = scalar_lea.sflag [#allocation4], %s325
        %s327 = sand.u32 %s109, 1
        %s328 = smul.addr %s327, 64
        %s329 = scalar_lea.vmem [#allocation8], %s328
        // Predicated region
        $region57: #{tpu_custom_call.1} parent=47 // pred_check
          %p330 = pneg %p122
        $region58: #{tpu_custom_call.1} parent=47 // pred_check_branch
          %332 = sbr.rel (%p330) target = $region60
        $region59: #{tpu_custom_call.1} parent=47 // pred_region
          %333 = dma.done %s326, 1024
        $region60: #{tpu_custom_call.1} parent=47 // pred_fallthru
          _
        // Predicated region
        $region61: #{tpu_custom_call.1} parent=47 // pred_check
          %p334 = pneg %p169
        $region62: #{tpu_custom_call.1} parent=47 // pred_check_branch
          %336 = sbr.rel (%p334) target = $region64
        $region63: #{tpu_custom_call.1} parent=47 // pred_region
          %337 = dma.done [#allocation7], 1024
        $region64: #{tpu_custom_call.1} parent=47 // pred_fallthru
          _
        %p338 = pneg %p54
        %p339 = pneg %p51
        %p340 = pneg %p75
        %p341 = pneg %p72
        %p342 = pneg %p96
        %p343 = pneg %p93
        %s344 = sand.u32 %s21, 1
        %s345 = scalar_lea.sflag [#allocation4], %s344
        %s346 = sand.u32 %s109, 1
        %s347 = smul.addr %s346, 64
        %s348 = scalar_lea.vmem [#allocation8], %s347
        %p349 = pneg %p122
        %p350 = pneg %p119
        %p351 = scmp.lt.s32.totalorder %s26, 1
        %s352 = scalar_select %p351, %s26, 1
        %s353 = scalar_lea.vmem %s4, %s352
        %p354 = pneg %p148
        %p355 = pneg %p145
        %p356 = pneg %p169
        %p357 = pneg %p166
        %p358 = pneg %p190
        %p359 = pneg %p187
        %p360 = pneg %p216
        %p361 = pneg %p213
        %s362 = smul.u32 2, %s25
        %p363 = scmp.lt.s32.totalorder %s26, 1
        %s364 = scalar_select %p363, %s26, 1
        %s365 = scalar_lea.vmem %s4, %s364
        %s366 = smul.u32 2, %s25
        %p368 = scmp.eq.s32.totalorder %s26, 0
        // Predicated region
        $region65: #{tpu_custom_call.1} parent=47 // pred_check
          %p369 = pneg %p368
        $region66: #{tpu_custom_call.1} parent=47 // pred_check_branch
          %371 = sbr.rel (%p369) target = $region68
        $region67: #{tpu_custom_call.1} parent=47 // pred_region
          %v372 = vld [vmem:[#allocation3] sm:$0xf]
          %v373 = vld [vmem:[#allocation3 + $0x4] sm:$0xf]
          %v374 = vld [vmem:[#allocation6] sm:$0xf]
          %v375 = vld [vmem:[#allocation6 + $0x4] sm:$0xf]
          %v376 = vld [vmem:[#allocation6 + $0x8] sm:$0xf]
          %v377 = vld [vmem:[#allocation6 + $0xc] sm:$0xf]
          %v378 = vld [vmem:[#allocation6 + $0x10] sm:$0xf]
          %v379 = vld [vmem:[#allocation6 + $0x14] sm:$0xf]
          %v380 = vld [vmem:[#allocation6 + $0x18] sm:$0xf]
          %v381 = vld [vmem:[#allocation6 + $0x1c] sm:$0xf]
          %v382 = vld [vmem:[#allocation6 + $0x20] sm:$0xf]
          %v383 = vld [vmem:[#allocation6 + $0x24] sm:$0xf]
          %v384 = vld [vmem:[#allocation6 + $0x28] sm:$0xf]
          %v385 = vld [vmem:[#allocation6 + $0x2c] sm:$0xf]
          %v386 = vld [vmem:[#allocation6 + $0x30] sm:$0xf]
          %v387 = vld [vmem:[#allocation6 + $0x34] sm:$0xf]
          %v388 = vld [vmem:[#allocation6 + $0x38] sm:$0xf]
          %v389 = vld [vmem:[#allocation6 + $0x3c] sm:$0xf]
          %v390 = vld [vmem:[%s2] sm:$0x1]
          %v392 = vlaneseq
          %v393 = vshrl.u32 %v392, 7
          %v394 = vsub.s32 0, %v393
          %v395 = vrot.slane %v390, %v394
          %v399 = vunpack.c.l.b16 %v372
          %v400 = vunpack.c.l.b16 %v373
          %v401 = vpack.c.b16 %v400, %v399
          %v419 = vunpack.c.l.b16 %v374
          %v420 = vunpack.c.l.b16 %v375
          %v421 = vunpack.c.l.b16 %v376
          %v422 = vunpack.c.l.b16 %v377
          %v423 = vunpack.c.l.b16 %v378
          %v424 = vunpack.c.l.b16 %v379
          %v425 = vunpack.c.l.b16 %v380
          %v426 = vunpack.c.l.b16 %v381
          %v427 = vunpack.c.l.b16 %v382
          %v428 = vunpack.c.l.b16 %v383
          %v429 = vunpack.c.l.b16 %v384
          %v430 = vunpack.c.l.b16 %v385
          %v431 = vunpack.c.l.b16 %v386
          %v432 = vunpack.c.l.b16 %v387
          %v433 = vunpack.c.l.b16 %v388
          %v434 = vunpack.c.l.b16 %v389
          %v435 = vpack.c.b16 %v420, %v419
          %v436 = vpack.c.b16 %v422, %v421
          %v437 = vpack.c.b16 %v424, %v423
          %v438 = vpack.c.b16 %v426, %v425
          %v439 = vpack.c.b16 %v428, %v427
          %v440 = vpack.c.b16 %v430, %v429
          %v441 = vpack.c.b16 %v432, %v431
          %v442 = vpack.c.b16 %v434, %v433
          %451 = vmatprep.subr.bf16.mxu0 0
          %452 = vmatpush1.bf16.msra.mxu0 %v435
          %453 = vmatprep.subr.bf16.mxu0 0
          %454 = vmatpush1.bf16.msra.mxu0 %v436
          %455 = vmatprep.subr.bf16.mxu0 0
          %456 = vmatpush1.bf16.msra.mxu0 %v437
          %457 = vmatprep.subr.bf16.mxu0 0
          %458 = vmatpush1.bf16.msra.mxu0 %v438
          %459 = vmatprep.subr.bf16.mxu0 0
          %460 = vmatpush1.bf16.msra.mxu0 %v439
          %461 = vmatprep.subr.bf16.mxu0 0
          %462 = vmatpush1.bf16.msra.mxu0 %v440
          %463 = vmatprep.subr.bf16.mxu0 0
          %464 = vmatpush1.bf16.msra.mxu0 %v441
          %465 = vmatprep.subr.bf16.mxu0 0
          %466 = vmatpush1.bf16.msra.mxu0 %v442
          %467 = vmatprep.subr.bf16.mxu0 0
          %468 = vmatpush1.bf16.msra.mxu0 0
          %469 = vmatprep.subr.bf16.mxu0 0
          %470 = vmatpush1.bf16.msra.mxu0 0
          %471 = vmatprep.subr.bf16.mxu0 0
          %472 = vmatpush1.bf16.msra.mxu0 0
          %473 = vmatprep.subr.bf16.mxu0 0
          %474 = vmatpush1.bf16.msra.mxu0 0
          %475 = vmatprep.subr.bf16.mxu0 0
          %476 = vmatpush1.bf16.msra.mxu0 0
          %477 = vmatprep.subr.bf16.mxu0 0
          %478 = vmatpush1.bf16.msra.mxu0 0
          %479 = vmatprep.subr.bf16.mxu0 0
          %480 = vmatpush1.bf16.msra.mxu0 0
          %481 = vmatprep.subr.bf16.mxu0 0
          %482 = vmatpush1.bf16.msra.mxu0 0
          %483 = vmatprep.mubr.bf16.mxu0 0
          %484 = vmatmul.mubr.bf16.gmra.mrb[0].mxu0 %v401
          %v485 = vpop.f32.mrb[0].mxu0
          %v486 = vadd.f32 %v395, %v485
          %v487 = vpop.f32.mrb[0].mxu0
          %v488 = vpop.f32.mrb[0].mxu0
          %v489 = vadd.f32 %v395, %v488
          %v490 = vpop.f32.mrb[0].mxu0
          %491 = vdwg.mxu0
          %v492 = vmax.f32 %v486, 0.0
          %v493 = vmax.f32 %v489, 0.0
          %v494 = vpack.c.bf16 %v493, %v492
          %495 = vst [vmem:[#allocation2] sm:$0xff] %v494
        $region68: #{tpu_custom_call.1} parent=47 // pred_fallthru
          _
        %v496 = vld [vmem:[#allocation2] sm:$0xff]
        %v497 = vld [vmem:[%s329] sm:$0xf]
        %v498 = vld [vmem:[%s329 + $0x4] sm:$0xf]
        %v499 = vld [vmem:[%s329 + $0x8] sm:$0xf]
        %v500 = vld [vmem:[%s329 + $0xc] sm:$0xf]
        %v501 = vld [vmem:[%s329 + $0x10] sm:$0xf]
        %v502 = vld [vmem:[%s329 + $0x14] sm:$0xf]
        %v503 = vld [vmem:[%s329 + $0x18] sm:$0xf]
        %v504 = vld [vmem:[%s329 + $0x1c] sm:$0xf]
        %v505 = vld [vmem:[%s329 + $0x20] sm:$0xf]
        %v506 = vld [vmem:[%s329 + $0x24] sm:$0xf]
        %v507 = vld [vmem:[%s329 + $0x28] sm:$0xf]
        %v508 = vld [vmem:[%s329 + $0x2c] sm:$0xf]
        %v509 = vld [vmem:[%s329 + $0x30] sm:$0xf]
        %v510 = vld [vmem:[%s329 + $0x34] sm:$0xf]
        %v511 = vld [vmem:[%s329 + $0x38] sm:$0xf]
        %v512 = vld [vmem:[%s329 + $0x3c] sm:$0xf]
        %v513 = vld [vmem:[%s365] sm:$0x1]
        %v515 = vlaneseq
        %v516 = vshrl.u32 %v515, 7
        %v517 = vsub.s32 0, %v516
        %v518 = vrot.slane %v513, %v517
        %v536 = vunpack.c.l.b16 %v497
        %v537 = vunpack.c.l.b16 %v498
        %v538 = vunpack.c.l.b16 %v499
        %v539 = vunpack.c.l.b16 %v500
        %v540 = vunpack.c.l.b16 %v501
        %v541 = vunpack.c.l.b16 %v502
        %v542 = vunpack.c.l.b16 %v503
        %v543 = vunpack.c.l.b16 %v504
        %v544 = vunpack.c.l.b16 %v505
        %v545 = vunpack.c.l.b16 %v506
        %v546 = vunpack.c.l.b16 %v507
        %v547 = vunpack.c.l.b16 %v508
        %v548 = vunpack.c.l.b16 %v509
        %v549 = vunpack.c.l.b16 %v510
        %v550 = vunpack.c.l.b16 %v511
        %v551 = vunpack.c.l.b16 %v512
        %v552 = vpack.c.b16 %v537, %v536
        %v553 = vpack.c.b16 %v539, %v538
        %v554 = vpack.c.b16 %v541, %v540
        %v555 = vpack.c.b16 %v543, %v542
        %v556 = vpack.c.b16 %v545, %v544
        %v557 = vpack.c.b16 %v547, %v546
        %v558 = vpack.c.b16 %v549, %v548
        %v559 = vpack.c.b16 %v551, %v550
        %568 = vmatprep.subr.bf16.mxu0 0
        %569 = vmatpush1.bf16.msra.mxu0 %v552
        %570 = vmatprep.subr.bf16.mxu0 0
        %571 = vmatpush1.bf16.msra.mxu0 %v553
        %572 = vmatprep.subr.bf16.mxu0 0
        %573 = vmatpush1.bf16.msra.mxu0 %v554
        %574 = vmatprep.subr.bf16.mxu0 0
        %575 = vmatpush1.bf16.msra.mxu0 %v555
        %576 = vmatprep.subr.bf16.mxu0 0
        %577 = vmatpush1.bf16.msra.mxu0 %v556
        %578 = vmatprep.subr.bf16.mxu0 0
        %579 = vmatpush1.bf16.msra.mxu0 %v557
        %580 = vmatprep.subr.bf16.mxu0 0
        %581 = vmatpush1.bf16.msra.mxu0 %v558
        %582 = vmatprep.subr.bf16.mxu0 0
        %583 = vmatpush1.bf16.msra.mxu0 %v559
        %584 = vmatprep.subr.bf16.mxu0 0
        %585 = vmatpush1.bf16.msra.mxu0 0
        %586 = vmatprep.subr.bf16.mxu0 0
        %587 = vmatpush1.bf16.msra.mxu0 0
        %588 = vmatprep.subr.bf16.mxu0 0
        %589 = vmatpush1.bf16.msra.mxu0 0
        %590 = vmatprep.subr.bf16.mxu0 0
        %591 = vmatpush1.bf16.msra.mxu0 0
        %592 = vmatprep.subr.bf16.mxu0 0
        %593 = vmatpush1.bf16.msra.mxu0 0
        %594 = vmatprep.subr.bf16.mxu0 0
        %595 = vmatpush1.bf16.msra.mxu0 0
        %596 = vmatprep.subr.bf16.mxu0 0
        %597 = vmatpush1.bf16.msra.mxu0 0
        %598 = vmatprep.subr.bf16.mxu0 0
        %599 = vmatpush1.bf16.msra.mxu0 0
        %600 = vmatprep.mubr.bf16.mxu0 0
        %601 = vmatmul.mubr.bf16.gmra.mrb[0].mxu0 %v496
        %v602 = vpop.f32.mrb[0].mxu0
        %v603 = vadd.f32 %v518, %v602
        %v604 = vpop.f32.mrb[0].mxu0
        %v605 = vpop.f32.mrb[0].mxu0
        %v606 = vadd.f32 %v518, %v605
        %v607 = vpop.f32.mrb[0].mxu0
        %608 = vdwg.mxu0
        %v609 = vmax.f32 %v603, 0.0
        %v610 = vmax.f32 %v606, 0.0
        %v611 = vpack.c.bf16 %v610, %v609
        %612 = vst [vmem:[#allocation2] sm:$0xff] %v611
        %p613 = scmp.eq.s32.totalorder %s26, 1
        // Predicated region
        $region69: #{tpu_custom_call.1} parent=47 // pred_check
          %p614 = pneg %p613
        $region70: #{tpu_custom_call.1} parent=47 // pred_check_branch
          %616 = sbr.rel (%p614) target = $region72
        $region71: #{tpu_custom_call.1} parent=47 // pred_region
          %v617 = vld [vmem:[#allocation2] sm:$0xff]
          %v618 = vld [vmem:[#allocation9] sm:$0xf]
          %v619 = vld [vmem:[#allocation9 + $0x4] sm:$0xf]
          %v620 = vld [vmem:[#allocation9 + $0x8] sm:$0xf]
          %v621 = vld [vmem:[#allocation9 + $0xc] sm:$0xf]
          %v622 = vld [vmem:[#allocation9 + $0x10] sm:$0xf]
          %v623 = vld [vmem:[#allocation9 + $0x14] sm:$0xf]
          %v624 = vld [vmem:[#allocation9 + $0x18] sm:$0xf]
          %v625 = vld [vmem:[#allocation9 + $0x1c] sm:$0xf]
          %v626 = vld [vmem:[#allocation9 + $0x20] sm:$0xf]
          %v627 = vld [vmem:[#allocation9 + $0x24] sm:$0xf]
          %v628 = vld [vmem:[#allocation9 + $0x28] sm:$0xf]
          %v629 = vld [vmem:[#allocation9 + $0x2c] sm:$0xf]
          %v630 = vld [vmem:[#allocation9 + $0x30] sm:$0xf]
          %v631 = vld [vmem:[#allocation9 + $0x34] sm:$0xf]
          %v632 = vld [vmem:[#allocation9 + $0x38] sm:$0xf]
          %v633 = vld [vmem:[#allocation9 + $0x3c] sm:$0xf]
          %v634 = vld [vmem:[%s6] sm:$0x1]
          %v636 = vlaneseq
          %v637 = vshrl.u32 %v636, 7
          %v638 = vsub.s32 0, %v637
          %v639 = vrot.slane %v634, %v638
          %v657 = vunpack.c.l.b16 %v618
          %v658 = vunpack.c.l.b16 %v619
          %v659 = vunpack.c.l.b16 %v620
          %v660 = vunpack.c.l.b16 %v621
          %v661 = vunpack.c.l.b16 %v622
          %v662 = vunpack.c.l.b16 %v623
          %v663 = vunpack.c.l.b16 %v624
          %v664 = vunpack.c.l.b16 %v625
          %v665 = vunpack.c.l.b16 %v626
          %v666 = vunpack.c.l.b16 %v627
          %v667 = vunpack.c.l.b16 %v628
          %v668 = vunpack.c.l.b16 %v629
          %v669 = vunpack.c.l.b16 %v630
          %v670 = vunpack.c.l.b16 %v631
          %v671 = vunpack.c.l.b16 %v632
          %v672 = vunpack.c.l.b16 %v633
          %v673 = vpack.c.b16 %v658, %v657
          %v674 = vpack.c.b16 %v660, %v659
          %v675 = vpack.c.b16 %v662, %v661
          %v676 = vpack.c.b16 %v664, %v663
          %v677 = vpack.c.b16 %v666, %v665
          %v678 = vpack.c.b16 %v668, %v667
          %v679 = vpack.c.b16 %v670, %v669
          %v680 = vpack.c.b16 %v672, %v671
          %689 = vmatprep.subr.bf16.mxu0 0
          %690 = vmatpush1.bf16.msra.mxu0 %v673
          %691 = vmatprep.subr.bf16.mxu0 0
          %692 = vmatpush1.bf16.msra.mxu0 %v674
          %693 = vmatprep.subr.bf16.mxu0 0
          %694 = vmatpush1.bf16.msra.mxu0 %v675
          %695 = vmatprep.subr.bf16.mxu0 0
          %696 = vmatpush1.bf16.msra.mxu0 %v676
          %697 = vmatprep.subr.bf16.mxu0 0
          %698 = vmatpush1.bf16.msra.mxu0 %v677
          %699 = vmatprep.subr.bf16.mxu0 0
          %700 = vmatpush1.bf16.msra.mxu0 %v678
          %701 = vmatprep.subr.bf16.mxu0 0
          %702 = vmatpush1.bf16.msra.mxu0 %v679
          %703 = vmatprep.subr.bf16.mxu0 0
          %704 = vmatpush1.bf16.msra.mxu0 %v680
          %705 = vmatprep.subr.bf16.mxu0 0
          %706 = vmatpush1.bf16.msra.mxu0 0
          %707 = vmatprep.subr.bf16.mxu0 0
          %708 = vmatpush1.bf16.msra.mxu0 0
          %709 = vmatprep.subr.bf16.mxu0 0
          %710 = vmatpush1.bf16.msra.mxu0 0
          %711 = vmatprep.subr.bf16.mxu0 0
          %712 = vmatpush1.bf16.msra.mxu0 0
          %713 = vmatprep.subr.bf16.mxu0 0
          %714 = vmatpush1.bf16.msra.mxu0 0
          %715 = vmatprep.subr.bf16.mxu0 0
          %716 = vmatpush1.bf16.msra.mxu0 0
          %717 = vmatprep.subr.bf16.mxu0 0
          %718 = vmatpush1.bf16.msra.mxu0 0
          %719 = vmatprep.subr.bf16.mxu0 0
          %720 = vmatpush1.bf16.msra.mxu0 0
          %721 = vmatprep.mubr.bf16.mxu0 0
          %722 = vmatmul.mubr.bf16.gmra.mrb[0].mxu0 %v617
          %v723 = vpop.f32.mrb[0].mxu0
          %v724 = vadd.f32 %v639, %v723
          %v725 = vpop.f32.mrb[0].mxu0
          %v726 = vpop.f32.mrb[0].mxu0
          %v727 = vadd.f32 %v639, %v726
          %v728 = vpop.f32.mrb[0].mxu0
          %729 = vdwg.mxu0
          %v730 = vmax.f32 %v724, 0.0
          %v731 = vmax.f32 %v727, 0.0
          %732 = vst [vmem:[#allocation10] sm:$0xff] %v730
          %733 = vst [vmem:[#allocation10 + $0x8] sm:$0xff] %v731
        $region72: #{tpu_custom_call.1} parent=47 // pred_fallthru
          _
        // Predicated region
        $region73: #{tpu_custom_call.1} parent=47 // pred_check
          %p734 = pneg %p213
        $region74: #{tpu_custom_call.1} parent=47 // pred_check_branch
          %736 = sbr.rel (%p734) target = $region76
        $region75: #{tpu_custom_call.1} parent=47 // pred_region
          %s737 = smul.u32 2, %s25
          %s739 = ssub.s32 256, 256
          %740 = vsyncadd [#allocation5], %s739
          %s741 = smul.addr %s737, 128
          %s742 = scalar_lea.hbm %s7, %s741
          %s743 = sshll.u32 [#allocation10], 4
          %s744 = int_to_ptr.vmem [resolvable:$true] %s743
          %749 = dma.vmem_to_hbm [thread:$0]  %s744, 256, %s742, [#allocation5], 128, 128, 8
        $region76: #{tpu_custom_call.1} parent=47 // pred_fallthru
          _
        // Predicated region
        $region77: #{tpu_custom_call.1} parent=47 // pred_check
          %p750 = pneg %p213
        $region78: #{tpu_custom_call.1} parent=47 // pred_check_branch
          %752 = sbr.rel (%p750) target = $region80
        $region79: #{tpu_custom_call.1} parent=47 // pred_region
          %753 = dma.done [#allocation5], 256
        $region80: #{tpu_custom_call.1} parent=47 // pred_fallthru
          _
      $region48: #{tpu_custom_call.1} parent=5 // pred_fallthru
        _
      %p754 = scmp.le.s32.totalorder 2, %s16
      // Predicated region
      $region81: #{tpu_custom_call.1} parent=5 // pred_check
        %p755 = pneg %p754
      $region82: #{tpu_custom_call.1} parent=5 // pred_check_branch
        %757 = sbr.rel (%p755) target = $region84
      $region83: #{tpu_custom_call.1} parent=5 // pred_region
        %s758 = ssub.s32 %s16, 2
      $region84: #{tpu_custom_call.1} parent=5 // pred_fallthru
        _
    $region6: #{tpu_custom_call.1} parent=1 // loop_footer
      %s20 = sadd.s32 1, %s16
    $region7: #{tpu_custom_call.1} parent=1 // loop_footer_branch
      %15 = sbr.rel target = $region3
    $region8: #{tpu_custom_call.1} parent=1 // loop_exit
      _
    %759 = vsyncpa [#allocation4], 1
    %s760 = scalar_lea.sflag [#allocation4], 1
    %761 = vsyncpa %s760, 1
    %762 = vsyncpa [#allocation7], 1
    %763 = vsyncpa [#allocation5], 1
    %s764 = scalar_lea.sflag [#allocation5], 1
    %765 = vsyncpa %s764, 1

</llo_original>
